<compile_context>
chip_gen: v6e
topology: v6e:2x2x1
jax: 0.10.0
libtpu: 0.0.40
codegen_flags: <defaults>
</compile_context>

<pallas_src>
import functools

import jax
import jax.numpy as jnp
from jax.experimental import pallas as pl
from jax.experimental.pallas import tpu as pltpu

_LANE = 128


def _mirt_kernel(theta_ref, a_ref, b_ref, o_ref, *, a_range):
    theta = theta_ref[...].astype(jnp.float32)          # (D, TB)
    a = a_ref[...].astype(jnp.float32)                  # (D, TB)
    if a_range is not None:
        # a_range * sigmoid(a)
        a = a_range * (1.0 / (1.0 + jnp.exp(-a)))
    else:
        # Numerically stable softplus: max(a, 0) + log1p(exp(-|a|)).
        a = jnp.maximum(a, 0.0) + jnp.log1p(jnp.exp(-jnp.abs(a)))
    b = b_ref[...].astype(jnp.float32)                  # (1, TB)
    # irt2pl: 1 / (1 + exp(-(sum(a*theta, -1)) + b)) == sigmoid(sum - b)
    logit = jnp.sum(a * theta, axis=0, keepdims=True) - b   # (1, TB)
    o_ref[...] = 1.0 / (1.0 + jnp.exp(-logit))


def mirt_forward(user, item, theta_emb, a_emb, b_emb, a_range, *, tb_max=1024):
    """Pallas-backed MIRTNet.forward.

    user, item : int32 (B,)
    theta_emb  : (user_num, latent_dim) f32
    a_emb      : (item_num, latent_dim) f32
    b_emb      : (item_num, 1)          f32
    a_range    : Python float or None (baked in at trace time)
    returns    : (B,) f32 probabilities
    """
    # Embedding gathers (glue, plain JAX), transposed so batch lands on lanes.
    theta_t = theta_emb[user].T          # (D, B)
    a_t = a_emb[item].T                  # (D, B)
    b_t = b_emb[item].T                  # (1, B)

    D, B = theta_t.shape

    # Pad the batch to a multiple of the lane tile; remainder handled by
    # padding (padded columns compute harmless garbage that is sliced off).
    b_pad = max(_LANE, pl.cdiv(B, _LANE) * _LANE)
    tb = min(tb_max, b_pad)
    b_pad = pl.cdiv(b_pad, tb) * tb
    if b_pad != B:
        pad = b_pad - B
        theta_t = jnp.pad(theta_t, ((0, 0), (0, pad)))
        a_t = jnp.pad(a_t, ((0, 0), (0, pad)))
        b_t = jnp.pad(b_t, ((0, 0), (0, pad)))

    grid = (b_pad // tb,)
    cost = pl.CostEstimate(
        flops=3 * b_pad * D,
        transcendentals=b_pad * D + b_pad,
        bytes_accessed=2 * b_pad * D * 4 + 2 * b_pad * 4,
    )

    out = pl.pallas_call(
        functools.partial(_mirt_kernel, a_range=a_range),
        out_shape=jax.ShapeDtypeStruct((1, b_pad), jnp.float32),
        grid=grid,
        in_specs=[
            pl.BlockSpec((D, tb), lambda i: (0, i)),
            pl.BlockSpec((D, tb), lambda i: (0, i)),
            pl.BlockSpec((1, tb), lambda i: (0, i)),
        ],
        out_specs=pl.BlockSpec((1, tb), lambda i: (0, i)),
        compiler_params=pltpu.CompilerParams(
            dimension_semantics=("parallel",),
        ),
        cost_estimate=cost,
    )(theta_t, a_t, b_t)
    return out[0, :B]


def _reference(user, item, theta_emb, a_emb, b_emb, a_range):
    theta = theta_emb[user]
    a = a_emb[item]
    if a_range is not None:
        a = a_range * jax.nn.sigmoid(a)
    else:
        a = jax.nn.softplus(a)
    b = b_emb[item][:, 0]
    return 1.0 / (1.0 + jnp.exp(-jnp.sum(a * theta, axis=-1) + b))


if __name__ == "__main__":
    # Deterministic synthetic parameters (shapes from MIRTNet.__init__).
    user_num, item_num, latent_dim = 20, 30, 32

    key = jax.random.PRNGKey(0)
    k_theta, k_a, k_b, k_u, k_i = jax.random.split(key, 5)

    theta_emb = jax.random.normal(k_theta, (user_num, latent_dim), jnp.float32)
    a_emb = jax.random.normal(k_a, (item_num, latent_dim), jnp.float32)
    b_emb = jax.random.normal(k_b, (item_num, 1), jnp.float32)

    # --- case 1: a_range set, small batch (single tile) ---
    batch = 8
    user = jax.random.randint(k_u, (batch,), 0, user_num, dtype=jnp.int32)
    item = jax.random.randint(k_i, (batch,), 0, item_num, dtype=jnp.int32)

    out = mirt_forward(user, item, theta_emb, a_emb, b_emb, 1.5)
    out = jax.block_until_ready(out)
    ref = _reference(user, item, theta_emb, a_emb, b_emb, 1.5)
    assert out.shape == (batch,)
    assert jnp.allclose(out, ref, atol=1e-5, rtol=1e-5), (out, ref)

    # --- case 2: a_range=None (softplus path), batch that needs tiling +
    #             remainder padding (grid > 1 with tb_max=128) ---
    batch2 = 300
    k_u2, k_i2 = jax.random.split(jax.random.PRNGKey(1), 2)
    user2 = jax.random.randint(k_u2, (batch2,), 0, user_num, dtype=jnp.int32)
    item2 = jax.random.randint(k_i2, (batch2,), 0, item_num, dtype=jnp.int32)

    out2 = mirt_forward(user2, item2, theta_emb, a_emb, b_emb, None,
                        tb_max=128)
    out2 = jax.block_until_ready(out2)
    ref2 = _reference(user2, item2, theta_emb, a_emb, b_emb, None)
    assert out2.shape == (batch2,)
    assert jnp.allclose(out2, ref2, atol=1e-5, rtol=1e-5), (out2, ref2)

    print("KERNEL_OK")
</pallas_src>

<mosaic_0001>
module attributes {stable_mosaic.version = 11 : i64} {
  func.func @_mirt_kernel(%arg0: i32, %arg1: memref<32x128xf32, #tpu.memory_space<vmem>>, %arg2: memref<32x128xf32, #tpu.memory_space<vmem>>, %arg3: memref<1x128xf32, #tpu.memory_space<vmem>>, %arg4: memref<1x128xf32, #tpu.memory_space<vmem>>) attributes {dimension_semantics = [#tpu.dimension_semantics<parallel>], iteration_bounds = array<i64: 1>, scalar_prefetch = 0 : i64, scratch_operands = 0 : i64, tpu.core_type = #tpu.core_type<tc>, window_params = [{transform_indices = @transform_0, window_bounds = array<i64: 32, 128>}, {transform_indices = @transform_1, window_bounds = array<i64: 32, 128>}, {transform_indices = @transform_2, window_bounds = array<i64: 1, 128>}, {transform_indices = @transform_3, window_bounds = array<i64: 1, 128>}]} {
    %c0 = arith.constant 0 : index
    %c0_0 = arith.constant 0 : index
    %0 = vector.load %arg1[%c0, %c0_0] : memref<32x128xf32, #tpu.memory_space<vmem>>, vector<32x128xf32>
    %c0_1 = arith.constant 0 : index
    %c0_2 = arith.constant 0 : index
    %1 = vector.load %arg2[%c0_1, %c0_2] : memref<32x128xf32, #tpu.memory_space<vmem>>, vector<32x128xf32>
    %cst = arith.constant 0.000000e+00 : f32
    %2 = vector.broadcast %cst : f32 to vector<32x128xf32>
    %3 = arith.subf %2, %1 : vector<32x128xf32>
    %4 = math.exp %3 : vector<32x128xf32>
    %cst_3 = arith.constant 1.000000e+00 : f32
    %5 = vector.broadcast %cst_3 : f32 to vector<32x128xf32>
    %6 = arith.addf %5, %4 : vector<32x128xf32>
    %cst_4 = arith.constant 1.000000e+00 : f32
    %7 = vector.broadcast %cst_4 : f32 to vector<32x128xf32>
    %8 = arith.divf %7, %6 : vector<32x128xf32>
    %cst_5 = arith.constant 1.500000e+00 : f32
    %9 = vector.broadcast %cst_5 : f32 to vector<32x128xf32>
    %10 = arith.mulf %9, %8 : vector<32x128xf32>
    %c0_6 = arith.constant 0 : index
    %c0_7 = arith.constant 0 : index
    %11 = vector.load %arg3[%c0_6, %c0_7] : memref<1x128xf32, #tpu.memory_space<vmem>>, vector<1x128xf32>
    %12 = arith.mulf %10, %0 : vector<32x128xf32>
    %cst_8 = arith.constant dense<0.000000e+00> : vector<128xf32>
    %13 = vector.multi_reduction <add>, %12, %cst_8 [0] : vector<32x128xf32> to vector<128xf32>
    %14 = vector.shape_cast %13 : vector<128xf32> to vector<1x128xf32>
    %15 = arith.subf %14, %11 : vector<1x128xf32>
    %cst_9 = arith.constant 0.000000e+00 : f32
    %16 = vector.broadcast %cst_9 : f32 to vector<1x128xf32>
    %17 = arith.subf %16, %15 : vector<1x128xf32>
    %18 = math.exp %17 : vector<1x128xf32>
    %cst_10 = arith.constant 1.000000e+00 : f32
    %19 = vector.broadcast %cst_10 : f32 to vector<1x128xf32>
    %20 = arith.addf %19, %18 : vector<1x128xf32>
    %cst_11 = arith.constant 1.000000e+00 : f32
    %21 = vector.broadcast %cst_11 : f32 to vector<1x128xf32>
    %22 = arith.divf %21, %20 : vector<1x128xf32>
    %c0_12 = arith.constant 0 : index
    %c0_13 = arith.constant 0 : index
    %23 = vector.load %arg4[%c0_12, %c0_13] : memref<1x128xf32, #tpu.memory_space<vmem>>, vector<1x128xf32>
    tpu.vector_store %arg4[%c0_12, %c0_13], %22 {strides = array<i32>} : memref<1x128xf32, #tpu.memory_space<vmem>>, vector<1x128xf32>,
    return
  }
  func.func @transform_0(%arg0: i32) -> (i32, i32) {
    %c0_i32 = arith.constant 0 : i32
    %c0_i32_0 = arith.constant 0 : i32
    return %c0_i32, %arg0 : i32, i32
  }
  func.func @transform_1(%arg0: i32) -> (i32, i32) {
    %c0_i32 = arith.constant 0 : i32
    %c0_i32_0 = arith.constant 0 : i32
    return %c0_i32, %arg0 : i32, i32
  }
  func.func @transform_2(%arg0: i32) -> (i32, i32) {
    %c0_i32 = arith.constant 0 : i32
    %c0_i32_0 = arith.constant 0 : i32
    return %c0_i32, %arg0 : i32, i32
  }
  func.func @transform_3(%arg0: i32) -> (i32, i32) {
    %c0_i32 = arith.constant 0 : i32
    %c0_i32_0 = arith.constant 0 : i32
    return %c0_i32, %arg0 : i32, i32
  }
}

</mosaic_0001>

<llo_original>
// kernel: tpu_custom_call.1
$region0: #{tpu_custom_call.1}
  #allocation0 [shape = 'u32[]', space=smem, size = 0x4, offset = 0x4, fixed_abs, tag = 'smem constant byte address 0x4 - core index']
  #allocation1 [shape = 'u32[144,128]{1,0:T(1,128)}', space=vmem, size = 0x12000, scoped, tag = 'internal scratch']
  %s0 = inlined_call_operand.hbm [shape: f32[32,128], index: 0, kind: input, shape index: {}]
  %s1 = inlined_call_operand.hbm [shape: f32[32,128], index: 1, kind: input, shape index: {}]
  %s2 = inlined_call_operand.vmem [shape: f32[1,128], index: 2, kind: input, shape index: {}]
  %s3 = inlined_call_operand.hbm [shape: f32[1,128], index: 3, kind: output, shape index: {}]
  %s4 = sld [smem:[#allocation0]]
  $region30: #{tpu_custom_call.1} parent=0
    _
  %s6 = ssub.s32 1, %s4
  %s7 = scalar_select 0, %s6, %s4
  $region1: #{tpu_custom_call.1} parent=0
    #allocation2 [shape = 'u8[16384]{0}', space=vmem, size = 0x4000, scoped, tag = 'input window, operand 0, single buffered']
    #allocation3 [shape = 's32[1]{0}', space=sflag, size = 0x4, scoped, tag = 'scoped memory for tpu_custom_call.1']
    #allocation4 [shape = 's32[1]{0}', space=sflag, size = 0x4, scoped, tag = 'scoped memory for tpu_custom_call.1']
    #allocation5 [shape = 'u8[16384]{0}', space=vmem, size = 0x4000, scoped, tag = 'input window, operand 1, single buffered']
    #allocation6 [shape = 's32[1]{0}', space=sflag, size = 0x4, scoped, tag = 'scoped memory for tpu_custom_call.1']
    #allocation7 [shape = 'u8[512]{0}', space=vmem, size = 0x400, scoped, tag = 'output window, operand 0, single buffered']
    %8 = vsyncpa [#allocation3], 0
    %9 = vsyncpa [#allocation6], 0
    %10 = vsyncpa [#allocation4], 0
    // Predicated region
    $region2: #{tpu_custom_call.1} parent=1 // pred_check
      _
    $region3: #{tpu_custom_call.1} parent=1 // pred_check_branch
      %12 = sbr.rel (0) target = $region5
    $region4: #{tpu_custom_call.1} parent=1 // pred_region
      %s14 = ssub.s32 512, 512
      %15 = vsyncadd [#allocation3], %s14
      %s16 = sshll.u32 [#allocation2], 4
      %s17 = int_to_ptr.vmem [resolvable:$true] %s16
      %22 = dma.hbm_to_vmem [thread:$0]  %s0, 512, %s17, [#allocation3], 128, 128, 8
    $region5: #{tpu_custom_call.1} parent=1 // pred_fallthru
      _
    // Predicated region
    $region6: #{tpu_custom_call.1} parent=1 // pred_check
      _
    $region7: #{tpu_custom_call.1} parent=1 // pred_check_branch
      %24 = sbr.rel (0) target = $region9
    $region8: #{tpu_custom_call.1} parent=1 // pred_region
      %s26 = ssub.s32 512, 512
      %27 = vsyncadd [#allocation6], %s26
      %s28 = sshll.u32 [#allocation5], 4
      %s29 = int_to_ptr.vmem [resolvable:$true] %s28
      %34 = dma.hbm_to_vmem [thread:$0]  %s1, 512, %s29, [#allocation6], 128, 128, 8
    $region9: #{tpu_custom_call.1} parent=1 // pred_fallthru
      _
    // Predicated region
    $region10: #{tpu_custom_call.1} parent=1 // pred_check
      _
    $region11: #{tpu_custom_call.1} parent=1 // pred_check_branch
      %36 = sbr.rel (0) target = $region13
    $region12: #{tpu_custom_call.1} parent=1 // pred_region
      _
    $region13: #{tpu_custom_call.1} parent=1 // pred_fallthru
      _
    // Predicated region
    $region14: #{tpu_custom_call.1} parent=1 // pred_check
      _
    $region15: #{tpu_custom_call.1} parent=1 // pred_check_branch
      %38 = sbr.rel (0) target = $region17
    $region16: #{tpu_custom_call.1} parent=1 // pred_region
      %39 = dma.done [#allocation3], 512
    $region17: #{tpu_custom_call.1} parent=1 // pred_fallthru
      _
    // Predicated region
    $region18: #{tpu_custom_call.1} parent=1 // pred_check
      _
    $region19: #{tpu_custom_call.1} parent=1 // pred_check_branch
      %41 = sbr.rel (0) target = $region21
    $region20: #{tpu_custom_call.1} parent=1 // pred_region
      %42 = dma.done [#allocation6], 512
    $region21: #{tpu_custom_call.1} parent=1 // pred_fallthru
      _
    %v43 = vld [vmem:[#allocation2] sm:$0xff]
    %v44 = vld [vmem:[#allocation2 + $0x8] sm:$0xff]
    %v45 = vld [vmem:[#allocation2 + $0x10] sm:$0xff]
    %v46 = vld [vmem:[#allocation2 + $0x18] sm:$0xff]
    %v47 = vld [vmem:[#allocation5] sm:$0xff]
    %v48 = vld [vmem:[#allocation5 + $0x8] sm:$0xff]
    %v49 = vld [vmem:[#allocation5 + $0x10] sm:$0xff]
    %v50 = vld [vmem:[#allocation5 + $0x18] sm:$0xff]
    %v51 = vsub.f32 0.0, %v47
    %v52 = vsub.f32 0.0, %v48
    %v53 = vsub.f32 0.0, %v49
    %v54 = vsub.f32 0.0, %v50
    %v55 = vmul.f32 %v51, 1.442695
    %v56 = vpow.pop %v55
    %v57 = vmul.f32 %v52, 1.442695
    %v58 = vpow.pop %v57
    %v59 = vmul.f32 %v53, 1.442695
    %v60 = vpow.pop %v59
    %v61 = vmul.f32 %v54, 1.442695
    %v62 = vpow.pop %v61
    %v63 = vadd.f32 %v56, 1.0
    %v64 = vadd.f32 %v58, 1.0
    %v65 = vadd.f32 %v60, 1.0
    %v66 = vadd.f32 %v62, 1.0
    %v67 = vrcp.pop %v63
    %v68 = vmul.f32 1.0, %v67
    %v69 = vrcp.pop %v64
    %v70 = vmul.f32 1.0, %v69
    %v71 = vrcp.pop %v65
    %v72 = vmul.f32 1.0, %v71
    %v73 = vrcp.pop %v66
    %v74 = vmul.f32 1.0, %v73
    %v75 = vmul.f32 %v68, 1.5
    %v76 = vmul.f32 %v70, 1.5
    %v77 = vmul.f32 %v72, 1.5
    %v78 = vmul.f32 %v74, 1.5
    %v79 = vld [vmem:[%s2] sm:$0x1]
    %v80 = vmul.f32 %v75, %v43
    %v81 = vmul.f32 %v76, %v44
    %v82 = vmul.f32 %v77, %v45
    %v83 = vmul.f32 %v78, %v46
    %v84 = vadd.f32 %v80, %v81
    %v85 = vadd.f32 %v84, %v82
    %v86 = vadd.f32 %v85, %v83
    %v87 = vrot.slane %v86, 4
    %v88 = vadd.f32 %v86, %v87
    %v89 = vrot.slane %v88, 2
    %v90 = vadd.f32 %v88, %v89
    %v91 = vrot.slane %v90, 1
    %v92 = vadd.f32 %v90, %v91
    %v93 = vsub.f32 %v92, %v79
    %v94 = vsub.f32 0.0, %v93
    %v95 = vmul.f32 %v94, 1.442695
    %v96 = vpow.pop %v95
    %v97 = vadd.f32 %v96, 1.0
    %v98 = vrcp.pop %v97
    %v99 = vmul.f32 1.0, %v98
    %100 = vst [vmem:[#allocation7] sm:$0x1] %v99
    // Predicated region
    $region22: #{tpu_custom_call.1} parent=1 // pred_check
      _
    $region23: #{tpu_custom_call.1} parent=1 // pred_check_branch
      %102 = sbr.rel (0) target = $region25
    $region24: #{tpu_custom_call.1} parent=1 // pred_region
      %s104 = ssub.s32 16, 16
      %105 = vsyncadd [#allocation4], %s104
      %s107 = sshll.u32 [#allocation7], 4
      %s108 = int_to_ptr.vmem [resolvable:$true] %s107
      %110 = dma.vmem_to_hbm [thread:$0]  %s108, 16, %s3, [#allocation4]
    $region25: #{tpu_custom_call.1} parent=1 // pred_fallthru
      _
    // Predicated region
    $region26: #{tpu_custom_call.1} parent=1 // pred_check
      _
    $region27: #{tpu_custom_call.1} parent=1 // pred_check_branch
      %112 = sbr.rel (0) target = $region29
    $region28: #{tpu_custom_call.1} parent=1 // pred_region
      %113 = dma.done [#allocation4], 16
    $region29: #{tpu_custom_call.1} parent=1 // pred_fallthru
      _
    %114 = vsyncpa [#allocation3], 1
    %115 = vsyncpa [#allocation6], 1
    %116 = vsyncpa [#allocation4], 1

</llo_original>
